<compile_context>
chip_gen: v5e
topology: v5e:2x2
jax: 0.10.0
libtpu: 0.0.40
codegen_flags: <defaults>
</compile_context>

<pallas_src>
import functools
import math

import jax
import jax.numpy as jnp
from jax import lax
from jax.experimental import pallas as pl
from jax.experimental.pallas import tpu as pltpu


def _round_up(x, m):
    return ((x + m - 1) // m) * m


def _pick_tiles(N, tq, tk):
    """Pick row/col tiles that divide N and are lane/sublane friendly."""
    if N % 128 != 0:
        # Fall back to a single full-extent tile (block == array shape is
        # always a legal BlockSpec).
        return N, N

    def pick(target):
        t = max((min(target, N) // 128) * 128, 128)
        while N % t:
            t -= 128
        return t

    # Large row tile amortizes the h_col re-stream (HBM bytes per score
    # element ~ Fp*2/tq for bf16 h); keep >= 2 row blocks so the "parallel"
    # axis can shard across v7x's two TensorCores.  Moderate column tile
    # (256) feeds the 256-wide MXU on v6e/v7x without blowing up the
    # (tq, tk) f32 temporaries.
    tq = pick(tq if tq is not None else max(min(512, N // 2), 128))
    tk = pick(tk if tk is not None else 256)
    return tq, tk


# ---------------------------------------------------------------------------
# Kernel 1: h = X @ W  (emitted as bf16 for cheap re-streaming) plus the two
# pre-negated per-node score halves, computed from the f32 h before the cast.
# ---------------------------------------------------------------------------
def _xw_kernel(x_ref, w_ref, a1_ref, a2_ref, h_ref, nf_ref, ng_ref):
    h = jnp.dot(x_ref[...], w_ref[...], preferred_element_type=jnp.float32)
    h_ref[...] = h.astype(jnp.bfloat16)
    # a . [h_i || h_j] = (a1 . h_i) + (a2 . h_j); both halves depend on a
    # single node, so compute them here once (sign pre-folded: store -f, -g).
    nf_ref[...] = -lax.dot_general(h, a1_ref[...], (((1,), (1,)), ((), ())),
                                   preferred_element_type=jnp.float32)
    ng_ref[...] = -lax.dot_general(h, a2_ref[...], (((1,), (1,)), ((), ())),
                                   preferred_element_type=jnp.float32)


def _compute_h_and_scores(x, w_pad, a1, a2, tq):
    N, Fin = x.shape
    Fp = w_pad.shape[1]
    return pl.pallas_call(
        _xw_kernel,
        out_shape=(jax.ShapeDtypeStruct((N, Fp), jnp.bfloat16),
                   jax.ShapeDtypeStruct((N, 1), jnp.float32),
                   jax.ShapeDtypeStruct((N, 1), jnp.float32)),
        grid_spec=pltpu.PrefetchScalarGridSpec(
            num_scalar_prefetch=0,
            grid=(N // tq,),
            in_specs=[
                pl.BlockSpec((tq, Fin), lambda i: (i, 0)),
                pl.BlockSpec((Fin, Fp), lambda i: (0, 0)),
                pl.BlockSpec((1, Fp), lambda i: (0, 0)),
                pl.BlockSpec((1, Fp), lambda i: (0, 0)),
            ],
            out_specs=(pl.BlockSpec((tq, Fp), lambda i: (i, 0)),
                       pl.BlockSpec((tq, 1), lambda i: (i, 0)),
                       pl.BlockSpec((tq, 1), lambda i: (i, 0))),
        ),
        compiler_params=pltpu.CompilerParams(
            dimension_semantics=("parallel",)),
        cost_estimate=pl.CostEstimate(
            flops=2 * N * Fin * Fp + 4 * N * Fp,
            transcendentals=0,
            bytes_accessed=4 * N * Fin + 4 * Fin * Fp + 2 * N * Fp + 8 * N),
    )(x, w_pad, a1, a2)


# ---------------------------------------------------------------------------
# Kernel 2: masked attention aggregation with online (stabilized) rowsum.
# ---------------------------------------------------------------------------
def _gat_attn_kernel(nf_ref, ng_ref, adj_ref, h_col_ref, out_ref,
                     m_sc, l_sc, acc_sc, *, alpha):
    k = pl.program_id(1)

    @pl.when(k == 0)
    def _init():
        m_sc[...] = jnp.full_like(m_sc, -jnp.inf)
        l_sc[...] = jnp.zeros_like(l_sc)
        acc_sc[...] = jnp.zeros_like(acc_sc)

    # sn = -(a . [h_i || h_j]); both halves precomputed and pre-negated in
    # kernel 1, so the per-score cost here is a single broadcast add.
    sn = nf_ref[...] + ng_ref[...]                       # (tq,1)+(1,tk)->(tq,tk)

    # z = -leakyrelu(-sn, alpha).  For 0 < alpha <= 1 this is min(sn, alpha*sn)
    # (one VPU op, no negation needed since the sign was folded upstream).
    if 0.0 < alpha <= 1.0:
        z = jnp.minimum(sn, alpha * sn)
    else:
        z = jnp.where(sn < 0.0, sn, alpha * sn)

    # Running-max stabilization; the exp(-m) scale cancels in the final divide,
    # so semantics match the reference while avoiding exp overflow.
    m_prev = m_sc[...]
    m_new = jnp.maximum(m_prev, jnp.max(z, axis=1, keepdims=True))
    corr = jnp.exp(m_prev - m_new)            # exp(-inf) == 0 on the first step
    p = jnp.exp(z - m_new)                    # (tq, tk), values in (0, 1]
    p = jnp.where(adj_ref[...] != 0, p, 0.0)  # int8 adjacency mask

    l_sc[...] = corr * l_sc[...] + jnp.sum(p, axis=1, keepdims=True)
    acc_sc[...] = corr * acc_sc[...] + jnp.dot(
        p.astype(jnp.bfloat16), h_col_ref[...],
        preferred_element_type=jnp.float32)
    m_sc[...] = m_new

    @pl.when(k == pl.num_programs(1) - 1)
    def _finalize():
        # Rows with no edges: acc == 0 and l == 0; the epsilon guard gives 0
        # instead of the NaN the PyTorch layer would produce for isolated
        # nodes (the usual GAT setup adds self-loops so this path is unused).
        l = jnp.maximum(l_sc[...], 1e-30)
        hp = acc_sc[...] * pl.reciprocal(l, approx=False)  # once per row block
        # ELU activation; clamp the expm1 argument so the discarded branch
        # never produces inf intermediates.
        out_ref[...] = jnp.where(hp > 0.0, hp,
                                 jnp.expm1(jnp.minimum(hp, 0.0)))


def sp_graph_attention(x, W, a, adj_mask, alpha, *, tq=None, tk=None):
    """x:(N,Fin), W:(Fin,Fout), a:(1,2*Fout), adj_mask:(N,N) nonzero==edge."""
    N, Fin = x.shape
    Fout = W.shape[1]
    tq, tk = _pick_tiles(N, tq, tk)
    assert N % tq == 0 and N % tk == 0

    # Pad the feature axis to a lane-dense multiple of 128.  Zero-padding is
    # exact: padded h / a columns contribute nothing; padded outputs sliced off.
    Fp = _round_up(Fout, 128)
    w_pad = jnp.zeros((Fin, Fp), jnp.float32).at[:, :Fout].set(
        W.astype(jnp.float32))
    a1 = jnp.zeros((1, Fp), jnp.float32).at[:, :Fout].set(
        a[:, :Fout].astype(jnp.float32))
    a2 = jnp.zeros((1, Fp), jnp.float32).at[:, :Fout].set(
        a[:, Fout:].astype(jnp.float32))

    adj_i8 = (adj_mask != 0).astype(jnp.int8)   # 4x less HBM traffic vs f32

    h_bf16, nf, ng_col = _compute_h_and_scores(
        x.astype(jnp.float32), w_pad, a1, a2, tq)
    ng = ng_col.reshape(1, N)   # column half streamed lane-dense as (1, tk) tiles

    kernel = functools.partial(_gat_attn_kernel, alpha=float(alpha))
    out_pad = pl.pallas_call(
        kernel,
        out_shape=jax.ShapeDtypeStruct((N, Fp), jnp.float32),
        grid_spec=pltpu.PrefetchScalarGridSpec(
            num_scalar_prefetch=0,
            grid=(N // tq, N // tk),
            in_specs=[
                pl.BlockSpec((tq, 1), lambda i, k: (i, 0)),    # -f (row half)
                pl.BlockSpec((1, tk), lambda i, k: (0, k)),    # -g (col half)
                pl.BlockSpec((tq, tk), lambda i, k: (i, k)),   # adjacency (int8)
                pl.BlockSpec((tk, Fp), lambda i, k: (k, 0)),   # h cols (bf16)
            ],
            out_specs=pl.BlockSpec((tq, Fp), lambda i, k: (i, 0)),
            scratch_shapes=[
                pltpu.VMEM((tq, 1), jnp.float32),    # running max
                pltpu.VMEM((tq, 1), jnp.float32),    # running rowsum
                pltpu.VMEM((tq, Fp), jnp.float32),   # running e @ h
            ],
        ),
        compiler_params=pltpu.CompilerParams(
            dimension_semantics=("parallel", "arbitrary"),
            vmem_limit_bytes=32 * 1024 * 1024),
        cost_estimate=pl.CostEstimate(
            flops=2 * N * N * Fp + 6 * N * N,
            transcendentals=N * N,
            bytes_accessed=N * N + 2 * N * Fp * (N // tq) + 4 * N * Fp + 8 * N),
    )(nf, ng, adj_i8, h_bf16)

    return out_pad[:, :Fout]


def _reference(x, W, a, adj_mask, alpha):
    """Pure-JAX dense f32 reference (equivalent to the sparse PyTorch forward)."""
    Fout = W.shape[1]
    h = x @ W
    s = (h @ a[0, :Fout])[:, None] + (h @ a[0, Fout:])[None, :]
    lrelu = jnp.where(s > 0.0, s, alpha * s)
    e = jnp.exp(-lrelu) * (adj_mask != 0).astype(jnp.float32)
    rowsum = jnp.sum(e, axis=1, keepdims=True)
    hp = (e @ h) / rowsum
    return jnp.where(hp > 0.0, hp, jnp.expm1(hp))


if __name__ == "__main__":
    # Small shapes consistent with the module: N nodes, Fin -> Fout features.
    N, Fin, Fout = 512, 32, 32
    alpha = 0.2

    key = jax.random.PRNGKey(0)
    kx, kw, ka, kadj = jax.random.split(key, 4)

    # Node features.
    x = jax.random.normal(kx, (N, Fin), dtype=jnp.float32)

    # xavier_normal_ with gain=1.414 : std = gain * sqrt(2 / (fan_in + fan_out))
    w_std = 1.414 * math.sqrt(2.0 / (Fin + Fout))
    W = w_std * jax.random.normal(kw, (Fin, Fout), dtype=jnp.float32)
    a_std = 1.414 * math.sqrt(2.0 / (1 + 2 * Fout))
    a = a_std * jax.random.normal(ka, (1, 2 * Fout), dtype=jnp.float32)

    # Deterministic sparse adjacency (~30% density) + self-loops (guarantees
    # rowsum > 0, matching the usual GAT setup).
    adj_mask = (jax.random.uniform(kadj, (N, N)) < 0.3).astype(jnp.float32)
    adj_mask = jnp.maximum(adj_mask, jnp.eye(N, dtype=jnp.float32))

    out = sp_graph_attention(x, W, a, adj_mask, alpha)
    out = jax.block_until_ready(out)

    ref = _reference(x, W, a, adj_mask, alpha)
    assert out.shape == (N, Fout)
    assert bool(jnp.isfinite(out).all())
    # bf16 h / bf16 p operands in the e @ h matmul -> loosen tolerance
    # relative to the pure-f32 reference.
    assert jnp.allclose(out, ref, atol=2e-2, rtol=2e-2), (
        "max abs diff = %f" % float(jnp.max(jnp.abs(out - ref))))

    print("KERNEL_OK")
</pallas_src>

<mosaic_0001>
module attributes {stable_mosaic.version = 11 : i64} {
  func.func @_xw_kernel(%arg0: i32, %arg1: memref<256x32xf32, #tpu.memory_space<vmem>>, %arg2: memref<32x128xf32, #tpu.memory_space<vmem>>, %arg3: memref<1x128xf32, #tpu.memory_space<vmem>>, %arg4: memref<1x128xf32, #tpu.memory_space<vmem>>, %arg5: memref<256x128xbf16, #tpu.memory_space<vmem>>, %arg6: memref<256x1xf32, #tpu.memory_space<vmem>>, %arg7: memref<256x1xf32, #tpu.memory_space<vmem>>) attributes {dimension_semantics = [#tpu.dimension_semantics<parallel>], iteration_bounds = array<i64: 2>, scalar_prefetch = 0 : i64, scratch_operands = 0 : i64, tpu.core_type = #tpu.core_type<tc>, window_params = [{transform_indices = @transform_0, window_bounds = array<i64: 256, 32>}, {pipeline_mode = #tpu.pipeline_mode<synchronous>, transform_indices = @transform_1, window_bounds = array<i64: 32, 128>}, {pipeline_mode = #tpu.pipeline_mode<synchronous>, transform_indices = @transform_2, window_bounds = array<i64: 1, 128>}, {pipeline_mode = #tpu.pipeline_mode<synchronous>, transform_indices = @transform_3, window_bounds = array<i64: 1, 128>}, {transform_indices = @transform_4, window_bounds = array<i64: 256, 128>}, {transform_indices = @transform_5, window_bounds = array<i64: 256, 1>}, {transform_indices = @transform_6, window_bounds = array<i64: 256, 1>}]} {
    %c0 = arith.constant 0 : index
    %c0_0 = arith.constant 0 : index
    %0 = vector.load %arg1[%c0, %c0_0] : memref<256x32xf32, #tpu.memory_space<vmem>>, vector<256x32xf32>
    %c0_1 = arith.constant 0 : index
    %c0_2 = arith.constant 0 : index
    %1 = vector.load %arg2[%c0_1, %c0_2] : memref<32x128xf32, #tpu.memory_space<vmem>>, vector<32x128xf32>
    %cst = arith.constant dense<0.000000e+00> : vector<256x128xf32>
    %2 = tpu.matmul %0, %1, %cst {dimension_numbers = #tpu.dot_dimension_numbers<[1], [0], [0], [1], [0, 0, 1, 1], [], []>} : vector<256x32xf32>, vector<32x128xf32>, vector<256x128xf32> -> vector<256x128xf32>
    %3 = arith.truncf %2 : vector<256x128xf32> to vector<256x128xbf16>
    %c0_3 = arith.constant 0 : index
    %c0_4 = arith.constant 0 : index
    %4 = vector.load %arg5[%c0_3, %c0_4] : memref<256x128xbf16, #tpu.memory_space<vmem>>, vector<256x128xbf16>
    tpu.vector_store %arg5[%c0_3, %c0_4], %3 {strides = array<i32>} : memref<256x128xbf16, #tpu.memory_space<vmem>>, vector<256x128xbf16>,
    %c0_5 = arith.constant 0 : index
    %c0_6 = arith.constant 0 : index
    %5 = vector.load %arg3[%c0_5, %c0_6] : memref<1x128xf32, #tpu.memory_space<vmem>>, vector<1x128xf32>
    %cst_7 = arith.constant dense<0.000000e+00> : vector<256x1xf32>
    %6 = tpu.matmul %2, %5, %cst_7 {dimension_numbers = #tpu.dot_dimension_numbers<[1], [1], [0], [0], [0, 0, 1, 0], [], []>} : vector<256x128xf32>, vector<1x128xf32>, vector<256x1xf32> -> vector<256x1xf32>
    %cst_8 = arith.constant 0.000000e+00 : f32
    %7 = vector.broadcast %cst_8 : f32 to vector<256x1xf32>
    %8 = arith.subf %7, %6 : vector<256x1xf32>
    %c0_9 = arith.constant 0 : index
    %c0_10 = arith.constant 0 : index
    %9 = vector.load %arg6[%c0_9, %c0_10] : memref<256x1xf32, #tpu.memory_space<vmem>>, vector<256x1xf32>
    tpu.vector_store %arg6[%c0_9, %c0_10], %8 {strides = array<i32>} : memref<256x1xf32, #tpu.memory_space<vmem>>, vector<256x1xf32>,
    %c0_11 = arith.constant 0 : index
    %c0_12 = arith.constant 0 : index
    %10 = vector.load %arg4[%c0_11, %c0_12] : memref<1x128xf32, #tpu.memory_space<vmem>>, vector<1x128xf32>
    %cst_13 = arith.constant dense<0.000000e+00> : vector<256x1xf32>
    %11 = tpu.matmul %2, %10, %cst_13 {dimension_numbers = #tpu.dot_dimension_numbers<[1], [1], [0], [0], [0, 0, 1, 0], [], []>} : vector<256x128xf32>, vector<1x128xf32>, vector<256x1xf32> -> vector<256x1xf32>
    %cst_14 = arith.constant 0.000000e+00 : f32
    %12 = vector.broadcast %cst_14 : f32 to vector<256x1xf32>
    %13 = arith.subf %12, %11 : vector<256x1xf32>
    %c0_15 = arith.constant 0 : index
    %c0_16 = arith.constant 0 : index
    %14 = vector.load %arg7[%c0_15, %c0_16] : memref<256x1xf32, #tpu.memory_space<vmem>>, vector<256x1xf32>
    tpu.vector_store %arg7[%c0_15, %c0_16], %13 {strides = array<i32>} : memref<256x1xf32, #tpu.memory_space<vmem>>, vector<256x1xf32>,
    return
  }
  func.func @transform_0(%arg0: i32) -> (i32, i32) {
    %c0_i32 = arith.constant 0 : i32
    %c0_i32_0 = arith.constant 0 : i32
    return %arg0, %c0_i32 : i32, i32
  }
  func.func @transform_1(%arg0: i32) -> (i32, i32) {
    %c0_i32 = arith.constant 0 : i32
    %c0_i32_0 = arith.constant 0 : i32
    %c0_i32_1 = arith.constant 0 : i32
    return %c0_i32, %c0_i32_0 : i32, i32
  }
  func.func @transform_2(%arg0: i32) -> (i32, i32) {
    %c0_i32 = arith.constant 0 : i32
    %c0_i32_0 = arith.constant 0 : i32
    %c0_i32_1 = arith.constant 0 : i32
    return %c0_i32, %c0_i32_0 : i32, i32
  }
  func.func @transform_3(%arg0: i32) -> (i32, i32) {
    %c0_i32 = arith.constant 0 : i32
    %c0_i32_0 = arith.constant 0 : i32
    %c0_i32_1 = arith.constant 0 : i32
    return %c0_i32, %c0_i32_0 : i32, i32
  }
  func.func @transform_4(%arg0: i32) -> (i32, i32) {
    %c0_i32 = arith.constant 0 : i32
    %c0_i32_0 = arith.constant 0 : i32
    return %arg0, %c0_i32 : i32, i32
  }
  func.func @transform_5(%arg0: i32) -> (i32, i32) {
    %c0_i32 = arith.constant 0 : i32
    %c0_i32_0 = arith.constant 0 : i32
    return %arg0, %c0_i32 : i32, i32
  }
  func.func @transform_6(%arg0: i32) -> (i32, i32) {
    %c0_i32 = arith.constant 0 : i32
    %c0_i32_0 = arith.constant 0 : i32
    return %arg0, %c0_i32 : i32, i32
  }
}

</mosaic_0001>

<llo_original>
// kernel: tpu_custom_call.1
$region0: #{tpu_custom_call.1}
  #allocation0 [shape = 'u32[]', space=smem, size = 0x4, offset = 0x4, fixed_abs, tag = 'smem constant byte address 0x4 - core index']
  #allocation1 [shape = 'u32[72,128]{1,0:T(1,128)}', space=vmem, size = 0x9000, scoped, tag = 'internal scratch']
  %s0 = inlined_call_operand.vmem [shape: f32[512,32], index: 0, kind: input, shape index: {}]
  %s1 = inlined_call_operand.vmem [shape: f32[32,128], index: 1, kind: input, shape index: {}]
  %s2 = inlined_call_operand.vmem [shape: f32[1,128], index: 2, kind: input, shape index: {}]
  %s3 = inlined_call_operand.vmem [shape: f32[1,128], index: 3, kind: input, shape index: {}]
  %s4 = inlined_call_operand.hbm [shape: bf16[512,128], index: 4, kind: output, shape index: {0}]
  %s5 = inlined_call_operand.vmem [shape: f32[512,1], index: 5, kind: output, shape index: {1}]
  %s6 = inlined_call_operand.vmem [shape: f32[512,1], index: 6, kind: output, shape index: {2}]
  %7 = xla_tuple %s4, %s5, %s6
  %s8 = sld [smem:[#allocation0]]
  $region65: #{tpu_custom_call.1} parent=0
    _
  %s10 = ssub.s32 1, %s8
  %s11 = scalar_select 0, %s10, %s8
  $region1: #{tpu_custom_call.1} parent=0
    #allocation2 [shape = 'u8[131072]{0}', space=vmem, size = 0x20000, scoped, tag = 'output window, operand 0']
    #allocation3 [shape = 's32[2]{0}', space=sflag, size = 0x8, scoped, tag = 'scoped memory for tpu_custom_call.1']
    %12 = vsyncpa [#allocation3], 0
    %s13 = scalar_lea.sflag [#allocation3], 1
    %14 = vsyncpa %s13, 0
    loop: start=0, step=1, limit=4
    $region2: #{tpu_custom_call.1} parent=1 // loop_pre_header
      _
    $region3: #{tpu_custom_call.1} parent=1 // loop_header
      %s16 = sphi 0, %s20
      %p17 = scmp.ge.s32.totalorder %s16, 4
      %s26 = sphi 0, %s28
      %s29 = sphi 0, %s26
      %s30 = sphi 0, %s29
      %s46 = sphi 0, %s30
      %s50 = sphi 0, %s50
      %s52 = sphi 0, %s50
      %s53 = sphi 0, %s52
      %s67 = sphi 0, %s53
      %s71 = sphi 0, %s71
      %s73 = sphi 0, %s71
      %s74 = sphi 0, %s73
      %s88 = sphi 0, %s74
      %s92 = sphi 0, %s92
      %s94 = sphi 0, %s92
      %s95 = sphi 0, %s94
      %s109 = sphi 0, %s95
      %s115 = sphi 0, %s117
      %s118 = sphi 0, %s115
      %s119 = sphi 0, %s118
      %s135 = sphi 0, %s119
      %s141 = sphi 0, %s143
      %s144 = sphi 0, %s141
      %s145 = sphi 0, %s144
      %s161 = sphi 0, %s145
      %s167 = sphi 0, %s169
      %s170 = sphi 0, %s167
      %s171 = sphi 0, %s170
      %s187 = sphi 0, %s171
    $region4: #{tpu_custom_call.1} parent=1 // loop_header_branch
      %19 = sbr.rel (%p17) target = $region8
    $region5: #{tpu_custom_call.1} parent=1 // loop_body
      %s21 = ssub.s32 %s16, 1
      %s22 = ssub.s32 %s16, 2
      %s23 = sadd.s32 %s16, 1
      %s24 = ssub.s32 %s16, %s23
      %p25 = scmp.eq.s32.totalorder %s24, 0
      %s27 = sadd.s32 %s26, 1
      %s28 = scalar_select %p25, %s26, %s27
      %p31 = pneg %p25
      %p32 = scmp.eq.s32.totalorder %s16, 1
      %p33 = por %p31, %p32
      %p34 = scmp.ne.s32.totalorder %s26, %s29
      %p35 = scmp.eq.s32.totalorder %s16, 0
      %p36 = por %p34, %p35
      %p37 = scmp.ne.s32.totalorder %s26, %s29
      %p38 = scmp.eq.s32.totalorder %s21, 1
      %p39 = por %p37, %p38
      %p40 = scmp.ne.s32.totalorder %s29, %s30
      %p41 = scmp.eq.s32.totalorder %s21, 0
      %p42 = por %p40, %p41
      %p43 = scmp.ne.s32.totalorder %s29, %s30
      %p44 = scmp.eq.s32.totalorder %s22, 1
      %p45 = por %p43, %p44
      %p47 = scmp.ne.s32.totalorder %s30, %s46
      %p48 = scmp.eq.s32.totalorder %s22, 0
      %p49 = por %p47, %p48
      %s51 = sadd.s32 %s50, 1
      %p54 = scmp.eq.s32.totalorder %s16, 1
      %p55 = scmp.ne.s32.totalorder %s50, %s52
      %p56 = scmp.eq.s32.totalorder %s16, 0
      %p57 = por %p55, %p56
      %p58 = scmp.ne.s32.totalorder %s50, %s52
      %p59 = scmp.eq.s32.totalorder %s21, 1
      %p60 = por %p58, %p59
      %p61 = scmp.ne.s32.totalorder %s52, %s53
      %p62 = scmp.eq.s32.totalorder %s21, 0
      %p63 = por %p61, %p62
      %p64 = scmp.ne.s32.totalorder %s52, %s53
      %p65 = scmp.eq.s32.totalorder %s22, 1
      %p66 = por %p64, %p65
      %p68 = scmp.ne.s32.totalorder %s53, %s67
      %p69 = scmp.eq.s32.totalorder %s22, 0
      %p70 = por %p68, %p69
      %s72 = sadd.s32 %s71, 1
      %p75 = scmp.eq.s32.totalorder %s16, 1
      %p76 = scmp.ne.s32.totalorder %s71, %s73
      %p77 = scmp.eq.s32.totalorder %s16, 0
      %p78 = por %p76, %p77
      %p79 = scmp.ne.s32.totalorder %s71, %s73
      %p80 = scmp.eq.s32.totalorder %s21, 1
      %p81 = por %p79, %p80
      %p82 = scmp.ne.s32.totalorder %s73, %s74
      %p83 = scmp.eq.s32.totalorder %s21, 0
      %p84 = por %p82, %p83
      %p85 = scmp.ne.s32.totalorder %s73, %s74
      %p86 = scmp.eq.s32.totalorder %s22, 1
      %p87 = por %p85, %p86
      %p89 = scmp.ne.s32.totalorder %s74, %s88
      %p90 = scmp.eq.s32.totalorder %s22, 0
      %p91 = por %p89, %p90
      %s93 = sadd.s32 %s92, 1
      %p96 = scmp.eq.s32.totalorder %s16, 1
      %p97 = scmp.ne.s32.totalorder %s92, %s94
      %p98 = scmp.eq.s32.totalorder %s16, 0
      %p99 = por %p97, %p98
      %p100 = scmp.ne.s32.totalorder %s92, %s94
      %p101 = scmp.eq.s32.totalorder %s21, 1
      %p102 = por %p100, %p101
      %p103 = scmp.ne.s32.totalorder %s94, %s95
      %p104 = scmp.eq.s32.totalorder %s21, 0
      %p105 = por %p103, %p104
      %p106 = scmp.ne.s32.totalorder %s94, %s95
      %p107 = scmp.eq.s32.totalorder %s22, 1
      %p108 = por %p106, %p107
      %p110 = scmp.ne.s32.totalorder %s95, %s109
      %p111 = scmp.eq.s32.totalorder %s22, 0
      %p112 = por %p110, %p111
      %s113 = ssub.s32 %s16, %s23
      %p114 = scmp.eq.s32.totalorder %s113, 0
      %s116 = sadd.s32 %s115, 1
      %s117 = scalar_select %p114, %s115, %s116
      %p120 = pneg %p114
      %p121 = scmp.eq.s32.totalorder %s16, 1
      %p122 = por %p120, %p121
      %p123 = scmp.ne.s32.totalorder %s115, %s118
      %p124 = scmp.eq.s32.totalorder %s16, 0
      %p125 = por %p123, %p124
      %p126 = scmp.ne.s32.totalorder %s115, %s118
      %p127 = scmp.eq.s32.totalorder %s21, 1
      %p128 = por %p126, %p127
      %p129 = scmp.ne.s32.totalorder %s118, %s119
      %p130 = scmp.eq.s32.totalorder %s21, 0
      %p131 = por %p129, %p130
      %p132 = scmp.ne.s32.totalorder %s118, %s119
      %p133 = scmp.eq.s32.totalorder %s22, 1
      %p134 = por %p132, %p133
      %p136 = scmp.ne.s32.totalorder %s119, %s135
      %p137 = scmp.eq.s32.totalorder %s22, 0
      %p138 = por %p136, %p137
      %s139 = ssub.s32 %s16, %s23
      %p140 = scmp.eq.s32.totalorder %s139, 0
      %s142 = sadd.s32 %s141, 1
      %s143 = scalar_select %p140, %s141, %s142
      %p146 = pneg %p140
      %p147 = scmp.eq.s32.totalorder %s16, 1
      %p148 = por %p146, %p147
      %p149 = scmp.ne.s32.totalorder %s141, %s144
      %p150 = scmp.eq.s32.totalorder %s16, 0
      %p151 = por %p149, %p150
      %p152 = scmp.ne.s32.totalorder %s141, %s144
      %p153 = scmp.eq.s32.totalorder %s21, 1
      %p154 = por %p152, %p153
      %p155 = scmp.ne.s32.totalorder %s144, %s145
      %p156 = scmp.eq.s32.totalorder %s21, 0
      %p157 = por %p155, %p156
      %p158 = scmp.ne.s32.totalorder %s144, %s145
      %p159 = scmp.eq.s32.totalorder %s22, 1
      %p160 = por %p158, %p159
      %p162 = scmp.ne.s32.totalorder %s145, %s161
      %p163 = scmp.eq.s32.totalorder %s22, 0
      %p164 = por %p162, %p163
      %s165 = ssub.s32 %s16, %s23
      %p166 = scmp.eq.s32.totalorder %s165, 0
      %s168 = sadd.s32 %s167, 1
      %s169 = scalar_select %p166, %s167, %s168
      %p172 = pneg %p166
      %p173 = scmp.eq.s32.totalorder %s16, 1
      %p174 = por %p172, %p173
      %p175 = scmp.ne.s32.totalorder %s167, %s170
      %p176 = scmp.eq.s32.totalorder %s16, 0
      %p177 = por %p175, %p176
      %p178 = scmp.ne.s32.totalorder %s167, %s170
      %p179 = scmp.eq.s32.totalorder %s21, 1
      %p180 = por %p178, %p179
      %p181 = scmp.ne.s32.totalorder %s170, %s171
      %p182 = scmp.eq.s32.totalorder %s21, 0
      %p183 = por %p181, %p182
      %p184 = scmp.ne.s32.totalorder %s170, %s171
      %p185 = scmp.eq.s32.totalorder %s22, 1
      %p186 = por %p184, %p185
      %p188 = scmp.ne.s32.totalorder %s171, %s187
      %p189 = scmp.eq.s32.totalorder %s22, 0
      %p190 = por %p188, %p189
      %p191 = scmp.le.s32.totalorder 1, %s16
      %p192 = scmp.lt.s32.totalorder %s16, 3
      %p193 = pnand %p191, %p192
      %p194 = pneg %p193
      // Predicated region
      $region9: #{tpu_custom_call.1} parent=5 // pred_check
        _
      $region10: #{tpu_custom_call.1} parent=5 // pred_check_branch
        %196 = sbr.rel (%p193) target = $region12
      $region11: #{tpu_custom_call.1} parent=5 // pred_region
        %s197 = ssub.s32 %s16, 1
        // Predicated region
        $region13: #{tpu_custom_call.1} parent=11 // pred_check
          %p198 = pneg %p63
        $region14: #{tpu_custom_call.1} parent=11 // pred_check_branch
          %200 = sbr.rel (%p198) target = $region16
        $region15: #{tpu_custom_call.1} parent=11 // pred_region
          _
        $region16: #{tpu_custom_call.1} parent=11 // pred_fallthru
          _
        // Predicated region
        $region17: #{tpu_custom_call.1} parent=11 // pred_check
          %p201 = pneg %p84
        $region18: #{tpu_custom_call.1} parent=11 // pred_check_branch
          %203 = sbr.rel (%p201) target = $region20
        $region19: #{tpu_custom_call.1} parent=11 // pred_region
          _
        $region20: #{tpu_custom_call.1} parent=11 // pred_fallthru
          _
        // Predicated region
        $region21: #{tpu_custom_call.1} parent=11 // pred_check
          %p204 = pneg %p105
        $region22: #{tpu_custom_call.1} parent=11 // pred_check_branch
          %206 = sbr.rel (%p204) target = $region24
        $region23: #{tpu_custom_call.1} parent=11 // pred_region
          _
        $region24: #{tpu_custom_call.1} parent=11 // pred_fallthru
          _
      $region12: #{tpu_custom_call.1} parent=5 // pred_fallthru
        _
      %p207 = scmp.lt.s32.totalorder %s16, 2
      // Predicated region
      $region25: #{tpu_custom_call.1} parent=5 // pred_check
        %p208 = pneg %p207
      $region26: #{tpu_custom_call.1} parent=5 // pred_check_branch
        %210 = sbr.rel (%p208) target = $region28
      $region27: #{tpu_custom_call.1} parent=5 // pred_region
        // Predicated region
        $region29: #{tpu_custom_call.1} parent=27 // pred_check
          %p211 = pneg %p36
        $region30: #{tpu_custom_call.1} parent=27 // pred_check_branch
          %213 = sbr.rel (%p211) target = $region32
        $region31: #{tpu_custom_call.1} parent=27 // pred_region
          %s214 = smul.u32 32, %s16
          %p215 = scmp.lt.s32.totalorder %s214, 63
          %s216 = scalar_select %p215, %s214, 63
          %s217 = smul.addr %s216, 8
          %s218 = scalar_lea.vmem %s0, %s217
          %s219 = smul.u32 32, %s16
        $region32: #{tpu_custom_call.1} parent=27 // pred_fallthru
          _
      $region28: #{tpu_custom_call.1} parent=5 // pred_fallthru
        _
      %p220 = scmp.le.s32.totalorder 1, %s16
      %p221 = scmp.lt.s32.totalorder %s16, 3
      %p222 = pnand %p220, %p221
      %p223 = pneg %p222
      // Predicated region
      $region33: #{tpu_custom_call.1} parent=5 // pred_check
        _
      $region34: #{tpu_custom_call.1} parent=5 // pred_check_branch
        %225 = sbr.rel (%p222) target = $region36
      $region35: #{tpu_custom_call.1} parent=5 // pred_region
        %s226 = ssub.s32 %s16, 1
        %s227 = smul.u32 32, %s21
        %p228 = scmp.lt.s32.totalorder %s227, 63
        %s229 = scalar_select %p228, %s227, 63
        %s230 = smul.addr %s229, 8
        %s231 = scalar_lea.vmem %s0, %s230
        %p232 = pneg %p42
        %p233 = pneg %p39
        %p234 = pneg %p63
        %p235 = pneg %p60
        %p236 = pneg %p84
        %p237 = pneg %p81
        %p238 = pneg %p105
        %p239 = pneg %p102
        %p240 = pneg %p131
        %p241 = pneg %p128
        %s242 = sand.u32 %s118, 1
        %s243 = scalar_lea.sflag [#allocation3], %s242
        %s244 = sand.u32 %s118, 1
        %s245 = smul.addr %s244, 128
        %s246 = scalar_lea.vmem [#allocation2], %s245
        %p247 = pneg %p157
        %p248 = pneg %p154
        %s249 = smul.u32 32, %s21
        %p250 = scmp.lt.s32.totalorder %s249, 63
        %s251 = scalar_select %p250, %s249, 63
        %s252 = smul.addr %s251, 8
        %s253 = scalar_lea.vmem %s5, %s252
        %p254 = pneg %p183
        %p255 = pneg %p180
        %s256 = smul.u32 32, %s21
        %p257 = scmp.lt.s32.totalorder %s256, 63
        %s258 = scalar_select %p257, %s256, 63
        %s259 = smul.addr %s258, 8
        %s260 = scalar_lea.vmem %s6, %s259
        %s261 = smul.u32 32, %s21
        %p262 = scmp.lt.s32.totalorder %s261, 63
        %s263 = scalar_select %p262, %s261, 63
        %s264 = smul.addr %s263, 8
        %s265 = scalar_lea.vmem %s0, %s264
        %s266 = smul.u32 32, %s21
        %s267 = smul.u32 32, %s21
        %s268 = smul.u32 32, %s21
        %p269 = scmp.lt.s32.totalorder %s268, 63
        %s270 = scalar_select %p269, %s268, 63
        %s271 = smul.addr %s270, 8
        %s272 = scalar_lea.vmem %s5, %s271
        %s273 = smul.u32 32, %s21
        %s274 = smul.u32 32, %s21
        %p275 = scmp.lt.s32.totalorder %s274, 63
        %s276 = scalar_select %p275, %s274, 63
        %s277 = smul.addr %s276, 8
        %s278 = scalar_lea.vmem %s6, %s277
        %s279 = smul.u32 32, %s21
        %v280 = vld [vmem:[%s265] sm:$0xff]
        %v281 = vld [vmem:[%s265 + $0x8] sm:$0xff]
        %v282 = vld [vmem:[%s265 + $0x10] sm:$0xff]
        %v283 = vld [vmem:[%s265 + $0x18] sm:$0xff]
        %v284 = vld [vmem:[%s265 + $0x20] sm:$0xff]
        %v285 = vld [vmem:[%s265 + $0x28] sm:$0xff]
        %v286 = vld [vmem:[%s265 + $0x30] sm:$0xff]
        %v287 = vld [vmem:[%s265 + $0x38] sm:$0xff]
        %v288 = vld [vmem:[%s265 + $0x40] sm:$0xff]
        %v289 = vld [vmem:[%s265 + $0x48] sm:$0xff]
        %v290 = vld [vmem:[%s265 + $0x50] sm:$0xff]
        %v291 = vld [vmem:[%s265 + $0x58] sm:$0xff]
        %v292 = vld [vmem:[%s265 + $0x60] sm:$0xff]
        %v293 = vld [vmem:[%s265 + $0x68] sm:$0xff]
        %v294 = vld [vmem:[%s265 + $0x70] sm:$0xff]
        %v295 = vld [vmem:[%s265 + $0x78] sm:$0xff]
        %v296 = vld [vmem:[%s265 + $0x80] sm:$0xff]
        %v297 = vld [vmem:[%s265 + $0x88] sm:$0xff]
        %v298 = vld [vmem:[%s265 + $0x90] sm:$0xff]
        %v299 = vld [vmem:[%s265 + $0x98] sm:$0xff]
        %v300 = vld [vmem:[%s265 + $0xa0] sm:$0xff]
        %v301 = vld [vmem:[%s265 + $0xa8] sm:$0xff]
        %v302 = vld [vmem:[%s265 + $0xb0] sm:$0xff]
        %v303 = vld [vmem:[%s265 + $0xb8] sm:$0xff]
        %v304 = vld [vmem:[%s265 + $0xc0] sm:$0xff]
        %v305 = vld [vmem:[%s265 + $0xc8] sm:$0xff]
        %v306 = vld [vmem:[%s265 + $0xd0] sm:$0xff]
        %v307 = vld [vmem:[%s265 + $0xd8] sm:$0xff]
        %v308 = vld [vmem:[%s265 + $0xe0] sm:$0xff]
        %v309 = vld [vmem:[%s265 + $0xe8] sm:$0xff]
        %v310 = vld [vmem:[%s265 + $0xf0] sm:$0xff]
        %v311 = vld [vmem:[%s265 + $0xf8] sm:$0xff]
        %v312 = vld [vmem:[%s1] sm:$0xff]
        %v313 = vld [vmem:[%s1 + $0x8] sm:$0xff]
        %v314 = vld [vmem:[%s1 + $0x10] sm:$0xff]
        %v315 = vld [vmem:[%s1 + $0x18] sm:$0xff]
        %vm316 = vcmask 261120
        %v318 = vsel %vm316, %v280, 0
        %v321 = vsel %vm316, %v281, 0
        %v324 = vsel %vm316, %v282, 0
        %v327 = vsel %vm316, %v283, 0
        %v330 = vsel %vm316, %v284, 0
        %v333 = vsel %vm316, %v285, 0
        %v336 = vsel %vm316, %v286, 0
        %v339 = vsel %vm316, %v287, 0
        %v342 = vsel %vm316, %v288, 0
        %v345 = vsel %vm316, %v289, 0
        %v348 = vsel %vm316, %v290, 0
        %v351 = vsel %vm316, %v291, 0
        %v354 = vsel %vm316, %v292, 0
        %v357 = vsel %vm316, %v293, 0
        %v360 = vsel %vm316, %v294, 0
        %v363 = vsel %vm316, %v295, 0
        %v366 = vsel %vm316, %v296, 0
        %v369 = vsel %vm316, %v297, 0
        %v372 = vsel %vm316, %v298, 0
        %v375 = vsel %vm316, %v299, 0
        %v378 = vsel %vm316, %v300, 0
        %v381 = vsel %vm316, %v301, 0
        %v384 = vsel %vm316, %v302, 0
        %v387 = vsel %vm316, %v303, 0
        %v390 = vsel %vm316, %v304, 0
        %v393 = vsel %vm316, %v305, 0
        %v396 = vsel %vm316, %v306, 0
        %v399 = vsel %vm316, %v307, 0
        %v402 = vsel %vm316, %v308, 0
        %v405 = vsel %vm316, %v309, 0
        %v408 = vsel %vm316, %v310, 0
        %v411 = vsel %vm316, %v311, 0
        %413 = vmatpush.msra.mxu0 0.0
        %414 = vmatpush.msra.mxu0 0.0
        %415 = vmatpush.msra.mxu0 0.0
        %416 = vmatpush.msra.mxu0 0.0
        %417 = vmatpush.msra.mxu0 0.0
        %418 = vmatpush.msra.mxu0 0.0
        %419 = vmatpush.msra.mxu0 0.0
        %420 = vmatpush.msra.mxu0 0.0
        %421 = vmatpush.msra.mxu0 0.0
        %422 = vmatpush.msra.mxu0 0.0
        %423 = vmatpush.msra.mxu0 0.0
        %424 = vmatpush.msra.mxu0 0.0
        %425 = vmatpush.msra.mxu0 %v315
        %426 = vmatpush.msra.mxu0 %v314
        %427 = vmatpush.msra.mxu0 %v313
        %428 = vmatpush.msra.mxu0 %v312
        %429 = vmatmul.f32.gmra.mxu0 %v318
        %v430 = vpop.f32.mrf.mxu0
        %v431 = vadd.f32 0.0, %v430
        %432 = vmatmul.f32.gmra.mxu0 %v321
        %v433 = vpop.f32.mrf.mxu0
        %v434 = vadd.f32 0.0, %v433
        %435 = vmatmul.f32.gmra.mxu0 %v324
        %v436 = vpop.f32.mrf.mxu0
        %v437 = vadd.f32 0.0, %v436
        %438 = vmatmul.f32.gmra.mxu0 %v327
        %v439 = vpop.f32.mrf.mxu0
        %v440 = vadd.f32 0.0, %v439
        %441 = vmatmul.f32.gmra.mxu0 %v330
        %v442 = vpop.f32.mrf.mxu0
        %v443 = vadd.f32 0.0, %v442
        %444 = vmatmul.f32.gmra.mxu0 %v333
        %v445 = vpop.f32.mrf.mxu0
        %v446 = vadd.f32 0.0, %v445
        %447 = vmatmul.f32.gmra.mxu0 %v336
        %v448 = vpop.f32.mrf.mxu0
        %v449 = vadd.f32 0.0, %v448
        %450 = vmatmul.f32.gmra.mxu0 %v339
        %v451 = vpop.f32.mrf.mxu0
        %v452 = vadd.f32 0.0, %v451
        %453 = vmatmul.f32.gmra.mxu0 %v342
        %v454 = vpop.f32.mrf.mxu0
        %v455 = vadd.f32 0.0, %v454
        %456 = vmatmul.f32.gmra.mxu0 %v345
        %v457 = vpop.f32.mrf.mxu0
        %v458 = vadd.f32 0.0, %v457
        %459 = vmatmul.f32.gmra.mxu0 %v348
        %v460 = vpop.f32.mrf.mxu0
        %v461 = vadd.f32 0.0, %v460
        %462 = vmatmul.f32.gmra.mxu0 %v351
        %v463 = vpop.f32.mrf.mxu0
        %v464 = vadd.f32 0.0, %v463
        %465 = vmatmul.f32.gmra.mxu0 %v354
        %v466 = vpop.f32.mrf.mxu0
        %v467 = vadd.f32 0.0, %v466
        %468 = vmatmul.f32.gmra.mxu0 %v357
        %v469 = vpop.f32.mrf.mxu0
        %v470 = vadd.f32 0.0, %v469
        %471 = vmatmul.f32.gmra.mxu0 %v360
        %v472 = vpop.f32.mrf.mxu0
        %v473 = vadd.f32 0.0, %v472
        %474 = vmatmul.f32.gmra.mxu0 %v363
        %v475 = vpop.f32.mrf.mxu0
        %v476 = vadd.f32 0.0, %v475
        %477 = vmatmul.f32.gmra.mxu0 %v366
        %v478 = vpop.f32.mrf.mxu0
        %v479 = vadd.f32 0.0, %v478
        %480 = vmatmul.f32.gmra.mxu0 %v369
        %v481 = vpop.f32.mrf.mxu0
        %v482 = vadd.f32 0.0, %v481
        %483 = vmatmul.f32.gmra.mxu0 %v372
        %v484 = vpop.f32.mrf.mxu0
        %v485 = vadd.f32 0.0, %v484
        %486 = vmatmul.f32.gmra.mxu0 %v375
        %v487 = vpop.f32.mrf.mxu0
        %v488 = vadd.f32 0.0, %v487
        %489 = vmatmul.f32.gmra.mxu0 %v378
        %v490 = vpop.f32.mrf.mxu0
        %v491 = vadd.f32 0.0, %v490
        %492 = vmatmul.f32.gmra.mxu0 %v381
        %v493 = vpop.f32.mrf.mxu0
        %v494 = vadd.f32 0.0, %v493
        %495 = vmatmul.f32.gmra.mxu0 %v384
        %v496 = vpop.f32.mrf.mxu0
        %v497 = vadd.f32 0.0, %v496
        %498 = vmatmul.f32.gmra.mxu0 %v387
        %v499 = vpop.f32.mrf.mxu0
        %v500 = vadd.f32 0.0, %v499
        %501 = vmatmul.f32.gmra.mxu0 %v390
        %v502 = vpop.f32.mrf.mxu0
        %v503 = vadd.f32 0.0, %v502
        %504 = vmatmul.f32.gmra.mxu0 %v393
        %v505 = vpop.f32.mrf.mxu0
        %v506 = vadd.f32 0.0, %v505
        %507 = vmatmul.f32.gmra.mxu0 %v396
        %v508 = vpop.f32.mrf.mxu0
        %v509 = vadd.f32 0.0, %v508
        %510 = vmatmul.f32.gmra.mxu0 %v399
        %v511 = vpop.f32.mrf.mxu0
        %v512 = vadd.f32 0.0, %v511
        %513 = vmatmul.f32.gmra.mxu0 %v402
        %v514 = vpop.f32.mrf.mxu0
        %v515 = vadd.f32 0.0, %v514
        %516 = vmatmul.f32.gmra.mxu0 %v405
        %v517 = vpop.f32.mrf.mxu0
        %v518 = vadd.f32 0.0, %v517
        %519 = vmatmul.f32.gmra.mxu0 %v408
        %v520 = vpop.f32.mrf.mxu0
        %v521 = vadd.f32 0.0, %v520
        %522 = vmatmul.f32.gmra.mxu0 %v411
        %v523 = vpop.f32.mrf.mxu0
        %v524 = vadd.f32 0.0, %v523
        %525 = vdwg.mxu0
        %v526 = vpack.c.bf16 %v431, %v431
        %v527 = vpack.c.bf16 %v434, %v434
        %v528 = vpack.c.bf16 %v437, %v437
        %v529 = vpack.c.bf16 %v440, %v440
        %v530 = vpack.c.bf16 %v443, %v443
        %v531 = vpack.c.bf16 %v446, %v446
        %v532 = vpack.c.bf16 %v449, %v449
        %v533 = vpack.c.bf16 %v452, %v452
        %v534 = vpack.c.bf16 %v455, %v455
        %v535 = vpack.c.bf16 %v458, %v458
        %v536 = vpack.c.bf16 %v461, %v461
        %v537 = vpack.c.bf16 %v464, %v464
        %v538 = vpack.c.bf16 %v467, %v467
        %v539 = vpack.c.bf16 %v470, %v470
        %v540 = vpack.c.bf16 %v473, %v473
        %v541 = vpack.c.bf16 %v476, %v476
        %v542 = vpack.c.bf16 %v479, %v479
        %v543 = vpack.c.bf16 %v482, %v482
        %v544 = vpack.c.bf16 %v485, %v485
        %v545 = vpack.c.bf16 %v488, %v488
        %v546 = vpack.c.bf16 %v491, %v491
        %v547 = vpack.c.bf16 %v494, %v494
        %v548 = vpack.c.bf16 %v497, %v497
        %v549 = vpack.c.bf16 %v500, %v500
        %v550 = vpack.c.bf16 %v503, %v503
        %v551 = vpack.c.bf16 %v506, %v506
        %v552 = vpack.c.bf16 %v509, %v509
        %v553 = vpack.c.bf16 %v512, %v512
        %v554 = vpack.c.bf16 %v515, %v515
        %v555 = vpack.c.bf16 %v518, %v518
        %v556 = vpack.c.bf16 %v521, %v521
        %v557 = vpack.c.bf16 %v524, %v524
        %558 = vst [vmem:[%s246] sm:$0xf] %v526
        %559 = vst [vmem:[%s246 + $0x4] sm:$0xf] %v527
        %560 = vst [vmem:[%s246 + $0x8] sm:$0xf] %v528
        %561 = vst [vmem:[%s246 + $0xc] sm:$0xf] %v529
        %562 = vst [vmem:[%s246 + $0x10] sm:$0xf] %v530
        %563 = vst [vmem:[%s246 + $0x14] sm:$0xf] %v531
        %564 = vst [vmem:[%s246 + $0x18] sm:$0xf] %v532
        %565 = vst [vmem:[%s246 + $0x1c] sm:$0xf] %v533
        %566 = vst [vmem:[%s246 + $0x20] sm:$0xf] %v534
        %567 = vst [vmem:[%s246 + $0x24] sm:$0xf] %v535
        %568 = vst [vmem:[%s246 + $0x28] sm:$0xf] %v536
        %569 = vst [vmem:[%s246 + $0x2c] sm:$0xf] %v537
        %570 = vst [vmem:[%s246 + $0x30] sm:$0xf] %v538
        %571 = vst [vmem:[%s246 + $0x34] sm:$0xf] %v539
        %572 = vst [vmem:[%s246 + $0x38] sm:$0xf] %v540
        %573 = vst [vmem:[%s246 + $0x3c] sm:$0xf] %v541
        %574 = vst [vmem:[%s246 + $0x40] sm:$0xf] %v542
        %575 = vst [vmem:[%s246 + $0x44] sm:$0xf] %v543
        %576 = vst [vmem:[%s246 + $0x48] sm:$0xf] %v544
        %577 = vst [vmem:[%s246 + $0x4c] sm:$0xf] %v545
        %578 = vst [vmem:[%s246 + $0x50] sm:$0xf] %v546
        %579 = vst [vmem:[%s246 + $0x54] sm:$0xf] %v547
        %580 = vst [vmem:[%s246 + $0x58] sm:$0xf] %v548
        %581 = vst [vmem:[%s246 + $0x5c] sm:$0xf] %v549
        %582 = vst [vmem:[%s246 + $0x60] sm:$0xf] %v550
        %583 = vst [vmem:[%s246 + $0x64] sm:$0xf] %v551
        %584 = vst [vmem:[%s246 + $0x68] sm:$0xf] %v552
        %585 = vst [vmem:[%s246 + $0x6c] sm:$0xf] %v553
        %586 = vst [vmem:[%s246 + $0x70] sm:$0xf] %v554
        %587 = vst [vmem:[%s246 + $0x74] sm:$0xf] %v555
        %588 = vst [vmem:[%s246 + $0x78] sm:$0xf] %v556
        %589 = vst [vmem:[%s246 + $0x7c] sm:$0xf] %v557
        %v590 = vld [vmem:[%s2] sm:$0x1]
        %v592 = vperm.slane %v590, 0
        %v594 = vmul.f32 %v431, %v592
        %v595 = vmul.f32 %v434, %v592
        %v596 = vmul.f32 %v437, %v592
        %v597 = vmul.f32 %v440, %v592
        %v598 = vmul.f32 %v443, %v592
        %v599 = vmul.f32 %v446, %v592
        %v600 = vmul.f32 %v449, %v592
        %v601 = vmul.f32 %v452, %v592
        %v602 = vmul.f32 %v455, %v592
        %v603 = vmul.f32 %v458, %v592
        %v604 = vmul.f32 %v461, %v592
        %v605 = vmul.f32 %v464, %v592
        %v606 = vmul.f32 %v467, %v592
        %v607 = vmul.f32 %v470, %v592
        %v608 = vmul.f32 %v473, %v592
        %v609 = vmul.f32 %v476, %v592
        %v610 = vmul.f32 %v479, %v592
        %v611 = vmul.f32 %v482, %v592
        %v612 = vmul.f32 %v485, %v592
        %v613 = vmul.f32 %v488, %v592
        %v614 = vmul.f32 %v491, %v592
        %v615 = vmul.f32 %v494, %v592
        %v616 = vmul.f32 %v497, %v592
        %v617 = vmul.f32 %v500, %v592
        %v618 = vmul.f32 %v503, %v592
        %v619 = vmul.f32 %v506, %v592
        %v620 = vmul.f32 %v509, %v592
        %v621 = vmul.f32 %v512, %v592
        %v622 = vmul.f32 %v515, %v592
        %v623 = vmul.f32 %v518, %v592
        %v624 = vmul.f32 %v521, %v592
        %v625 = vmul.f32 %v524, %v592
        %626 = vadd.xlane.f32.xlu0 %v594
        %v627 = vpop.xlane.xlu0 %626
        %628 = vadd.xlane.f32.xlu0 %v595
        %v629 = vpop.xlane.xlu0 %628
        %630 = vadd.xlane.f32.xlu0 %v596
        %v631 = vpop.xlane.xlu0 %630
        %632 = vadd.xlane.f32.xlu0 %v597
        %v633 = vpop.xlane.xlu0 %632
        %634 = vadd.xlane.f32.xlu0 %v598
        %v635 = vpop.xlane.xlu0 %634
        %636 = vadd.xlane.f32.xlu0 %v599
        %v637 = vpop.xlane.xlu0 %636
        %638 = vadd.xlane.f32.xlu0 %v600
        %v639 = vpop.xlane.xlu0 %638
        %640 = vadd.xlane.f32.xlu0 %v601
        %v641 = vpop.xlane.xlu0 %640
        %642 = vadd.xlane.f32.xlu0 %v602
        %v643 = vpop.xlane.xlu0 %642
        %644 = vadd.xlane.f32.xlu0 %v603
        %v645 = vpop.xlane.xlu0 %644
        %646 = vadd.xlane.f32.xlu0 %v604
        %v647 = vpop.xlane.xlu0 %646
        %648 = vadd.xlane.f32.xlu0 %v605
        %v649 = vpop.xlane.xlu0 %648
        %650 = vadd.xlane.f32.xlu0 %v606
        %v651 = vpop.xlane.xlu0 %650
        %652 = vadd.xlane.f32.xlu0 %v607
        %v653 = vpop.xlane.xlu0 %652
        %654 = vadd.xlane.f32.xlu0 %v608
        %v655 = vpop.xlane.xlu0 %654
        %656 = vadd.xlane.f32.xlu0 %v609
        %v657 = vpop.xlane.xlu0 %656
        %658 = vadd.xlane.f32.xlu0 %v610
        %v659 = vpop.xlane.xlu0 %658
        %660 = vadd.xlane.f32.xlu0 %v611
        %v661 = vpop.xlane.xlu0 %660
        %662 = vadd.xlane.f32.xlu0 %v612
        %v663 = vpop.xlane.xlu0 %662
        %664 = vadd.xlane.f32.xlu0 %v613
        %v665 = vpop.xlane.xlu0 %664
        %666 = vadd.xlane.f32.xlu0 %v614
        %v667 = vpop.xlane.xlu0 %666
        %668 = vadd.xlane.f32.xlu0 %v615
        %v669 = vpop.xlane.xlu0 %668
        %670 = vadd.xlane.f32.xlu0 %v616
        %v671 = vpop.xlane.xlu0 %670
        %672 = vadd.xlane.f32.xlu0 %v617
        %v673 = vpop.xlane.xlu0 %672
        %674 = vadd.xlane.f32.xlu0 %v618
        %v675 = vpop.xlane.xlu0 %674
        %676 = vadd.xlane.f32.xlu0 %v619
        %v677 = vpop.xlane.xlu0 %676
        %678 = vadd.xlane.f32.xlu0 %v620
        %v679 = vpop.xlane.xlu0 %678
        %680 = vadd.xlane.f32.xlu0 %v621
        %v681 = vpop.xlane.xlu0 %680
        %682 = vadd.xlane.f32.xlu0 %v622
        %v683 = vpop.xlane.xlu0 %682
        %684 = vadd.xlane.f32.xlu0 %v623
        %v685 = vpop.xlane.xlu0 %684
        %686 = vadd.xlane.f32.xlu0 %v624
        %v687 = vpop.xlane.xlu0 %686
        %688 = vadd.xlane.f32.xlu0 %v625
        %v689 = vpop.xlane.xlu0 %688
        %v690 = vsub.f32 0.0, %v627
        %v691 = vsub.f32 0.0, %v629
        %v692 = vsub.f32 0.0, %v631
        %v693 = vsub.f32 0.0, %v633
        %v694 = vsub.f32 0.0, %v635
        %v695 = vsub.f32 0.0, %v637
        %v696 = vsub.f32 0.0, %v639
        %v697 = vsub.f32 0.0, %v641
        %v698 = vsub.f32 0.0, %v643
        %v699 = vsub.f32 0.0, %v645
        %v700 = vsub.f32 0.0, %v647
        %v701 = vsub.f32 0.0, %v649
        %v702 = vsub.f32 0.0, %v651
        %v703 = vsub.f32 0.0, %v653
        %v704 = vsub.f32 0.0, %v655
        %v705 = vsub.f32 0.0, %v657
        %v706 = vsub.f32 0.0, %v659
        %v707 = vsub.f32 0.0, %v661
        %v708 = vsub.f32 0.0, %v663
        %v709 = vsub.f32 0.0, %v665
        %v710 = vsub.f32 0.0, %v667
        %v711 = vsub.f32 0.0, %v669
        %v712 = vsub.f32 0.0, %v671
        %v713 = vsub.f32 0.0, %v673
        %v714 = vsub.f32 0.0, %v675
        %v715 = vsub.f32 0.0, %v677
        %v716 = vsub.f32 0.0, %v679
        %v717 = vsub.f32 0.0, %v681
        %v718 = vsub.f32 0.0, %v683
        %v719 = vsub.f32 0.0, %v685
        %v720 = vsub.f32 0.0, %v687
        %v721 = vsub.f32 0.0, %v689
        %vm722 = vcmask 7168
        %723 = vst.msk [vmem:[%s272] sm:$0xff] %vm722, %v690
        %724 = vst.msk [vmem:[%s272 + $0x8] sm:$0xff] %vm722, %v691
        %725 = vst.msk [vmem:[%s272 + $0x10] sm:$0xff] %vm722, %v692
        %726 = vst.msk [vmem:[%s272 + $0x18] sm:$0xff] %vm722, %v693
        %727 = vst.msk [vmem:[%s272 + $0x20] sm:$0xff] %vm722, %v694
        %728 = vst.msk [vmem:[%s272 + $0x28] sm:$0xff] %vm722, %v695
        %729 = vst.msk [vmem:[%s272 + $0x30] sm:$0xff] %vm722, %v696
        %730 = vst.msk [vmem:[%s272 + $0x38] sm:$0xff] %vm722, %v697
        %731 = vst.msk [vmem:[%s272 + $0x40] sm:$0xff] %vm722, %v698
        %732 = vst.msk [vmem:[%s272 + $0x48] sm:$0xff] %vm722, %v699
        %733 = vst.msk [vmem:[%s272 + $0x50] sm:$0xff] %vm722, %v700
        %734 = vst.msk [vmem:[%s272 + $0x58] sm:$0xff] %vm722, %v701
        %735 = vst.msk [vmem:[%s272 + $0x60] sm:$0xff] %vm722, %v702
        %736 = vst.msk [vmem:[%s272 + $0x68] sm:$0xff] %vm722, %v703
        %737 = vst.msk [vmem:[%s272 + $0x70] sm:$0xff] %vm722, %v704
        %738 = vst.msk [vmem:[%s272 + $0x78] sm:$0xff] %vm722, %v705
        %739 = vst.msk [vmem:[%s272 + $0x80] sm:$0xff] %vm722, %v706
        %740 = vst.msk [vmem:[%s272 + $0x88] sm:$0xff] %vm722, %v707
        %741 = vst.msk [vmem:[%s272 + $0x90] sm:$0xff] %vm722, %v708
        %742 = vst.msk [vmem:[%s272 + $0x98] sm:$0xff] %vm722, %v709
        %743 = vst.msk [vmem:[%s272 + $0xa0] sm:$0xff] %vm722, %v710
        %744 = vst.msk [vmem:[%s272 + $0xa8] sm:$0xff] %vm722, %v711
        %745 = vst.msk [vmem:[%s272 + $0xb0] sm:$0xff] %vm722, %v712
        %746 = vst.msk [vmem:[%s272 + $0xb8] sm:$0xff] %vm722, %v713
        %747 = vst.msk [vmem:[%s272 + $0xc0] sm:$0xff] %vm722, %v714
        %748 = vst.msk [vmem:[%s272 + $0xc8] sm:$0xff] %vm722, %v715
        %749 = vst.msk [vmem:[%s272 + $0xd0] sm:$0xff] %vm722, %v716
        %750 = vst.msk [vmem:[%s272 + $0xd8] sm:$0xff] %vm722, %v717
        %751 = vst.msk [vmem:[%s272 + $0xe0] sm:$0xff] %vm722, %v718
        %752 = vst.msk [vmem:[%s272 + $0xe8] sm:$0xff] %vm722, %v719
        %753 = vst.msk [vmem:[%s272 + $0xf0] sm:$0xff] %vm722, %v720
        %754 = vst.msk [vmem:[%s272 + $0xf8] sm:$0xff] %vm722, %v721
        %v755 = vld [vmem:[%s3] sm:$0x1]
        %v757 = vperm.slane %v755, 0
        %v759 = vmul.f32 %v431, %v757
        %v760 = vmul.f32 %v434, %v757
        %v761 = vmul.f32 %v437, %v757
        %v762 = vmul.f32 %v440, %v757
        %v763 = vmul.f32 %v443, %v757
        %v764 = vmul.f32 %v446, %v757
        %v765 = vmul.f32 %v449, %v757
        %v766 = vmul.f32 %v452, %v757
        %v767 = vmul.f32 %v455, %v757
        %v768 = vmul.f32 %v458, %v757
        %v769 = vmul.f32 %v461, %v757
        %v770 = vmul.f32 %v464, %v757
        %v771 = vmul.f32 %v467, %v757
        %v772 = vmul.f32 %v470, %v757
        %v773 = vmul.f32 %v473, %v757
        %v774 = vmul.f32 %v476, %v757
        %v775 = vmul.f32 %v479, %v757
        %v776 = vmul.f32 %v482, %v757
        %v777 = vmul.f32 %v485, %v757
        %v778 = vmul.f32 %v488, %v757
        %v779 = vmul.f32 %v491, %v757
        %v780 = vmul.f32 %v494, %v757
        %v781 = vmul.f32 %v497, %v757
        %v782 = vmul.f32 %v500, %v757
        %v783 = vmul.f32 %v503, %v757
        %v784 = vmul.f32 %v506, %v757
        %v785 = vmul.f32 %v509, %v757
        %v786 = vmul.f32 %v512, %v757
        %v787 = vmul.f32 %v515, %v757
        %v788 = vmul.f32 %v518, %v757
        %v789 = vmul.f32 %v521, %v757
        %v790 = vmul.f32 %v524, %v757
        %791 = vadd.xlane.f32.xlu0 %v759
        %v792 = vpop.xlane.xlu0 %791
        %793 = vadd.xlane.f32.xlu0 %v760
        %v794 = vpop.xlane.xlu0 %793
        %795 = vadd.xlane.f32.xlu0 %v761
        %v796 = vpop.xlane.xlu0 %795
        %797 = vadd.xlane.f32.xlu0 %v762
        %v798 = vpop.xlane.xlu0 %797
        %799 = vadd.xlane.f32.xlu0 %v763
        %v800 = vpop.xlane.xlu0 %799
        %801 = vadd.xlane.f32.xlu0 %v764
        %v802 = vpop.xlane.xlu0 %801
        %803 = vadd.xlane.f32.xlu0 %v765
        %v804 = vpop.xlane.xlu0 %803
        %805 = vadd.xlane.f32.xlu0 %v766
        %v806 = vpop.xlane.xlu0 %805
        %807 = vadd.xlane.f32.xlu0 %v767
        %v808 = vpop.xlane.xlu0 %807
        %809 = vadd.xlane.f32.xlu0 %v768
        %v810 = vpop.xlane.xlu0 %809
        %811 = vadd.xlane.f32.xlu0 %v769
        %v812 = vpop.xlane.xlu0 %811
        %813 = vadd.xlane.f32.xlu0 %v770
        %v814 = vpop.xlane.xlu0 %813
        %815 = vadd.xlane.f32.xlu0 %v771
        %v816 = vpop.xlane.xlu0 %815
        %817 = vadd.xlane.f32.xlu0 %v772
        %v818 = vpop.xlane.xlu0 %817
        %819 = vadd.xlane.f32.xlu0 %v773
        %v820 = vpop.xlane.xlu0 %819
        %821 = vadd.xlane.f32.xlu0 %v774
        %v822 = vpop.xlane.xlu0 %821
        %823 = vadd.xlane.f32.xlu0 %v775
        %v824 = vpop.xlane.xlu0 %823
        %825 = vadd.xlane.f32.xlu0 %v776
        %v826 = vpop.xlane.xlu0 %825
        %827 = vadd.xlane.f32.xlu0 %v777
        %v828 = vpop.xlane.xlu0 %827
        %829 = vadd.xlane.f32.xlu0 %v778
        %v830 = vpop.xlane.xlu0 %829
        %831 = vadd.xlane.f32.xlu0 %v779
        %v832 = vpop.xlane.xlu0 %831
        %833 = vadd.xlane.f32.xlu0 %v780
        %v834 = vpop.xlane.xlu0 %833
        %835 = vadd.xlane.f32.xlu0 %v781
        %v836 = vpop.xlane.xlu0 %835
        %837 = vadd.xlane.f32.xlu0 %v782
        %v838 = vpop.xlane.xlu0 %837
        %839 = vadd.xlane.f32.xlu0 %v783
        %v840 = vpop.xlane.xlu0 %839
        %841 = vadd.xlane.f32.xlu0 %v784
        %v842 = vpop.xlane.xlu0 %841
        %843 = vadd.xlane.f32.xlu0 %v785
        %v844 = vpop.xlane.xlu0 %843
        %845 = vadd.xlane.f32.xlu0 %v786
        %v846 = vpop.xlane.xlu0 %845
        %847 = vadd.xlane.f32.xlu0 %v787
        %v848 = vpop.xlane.xlu0 %847
        %849 = vadd.xlane.f32.xlu0 %v788
        %v850 = vpop.xlane.xlu0 %849
        %851 = vadd.xlane.f32.xlu0 %v789
        %v852 = vpop.xlane.xlu0 %851
        %853 = vadd.xlane.f32.xlu0 %v790
        %v854 = vpop.xlane.xlu0 %853
        %v855 = vsub.f32 0.0, %v792
        %v856 = vsub.f32 0.0, %v794
        %v857 = vsub.f32 0.0, %v796
        %v858 = vsub.f32 0.0, %v798
        %v859 = vsub.f32 0.0, %v800
        %v860 = vsub.f32 0.0, %v802
        %v861 = vsub.f32 0.0, %v804
        %v862 = vsub.f32 0.0, %v806
        %v863 = vsub.f32 0.0, %v808
        %v864 = vsub.f32 0.0, %v810
        %v865 = vsub.f32 0.0, %v812
        %v866 = vsub.f32 0.0, %v814
        %v867 = vsub.f32 0.0, %v816
        %v868 = vsub.f32 0.0, %v818
        %v869 = vsub.f32 0.0, %v820
        %v870 = vsub.f32 0.0, %v822
        %v871 = vsub.f32 0.0, %v824
        %v872 = vsub.f32 0.0, %v826
        %v873 = vsub.f32 0.0, %v828
        %v874 = vsub.f32 0.0, %v830
        %v875 = vsub.f32 0.0, %v832
        %v876 = vsub.f32 0.0, %v834
        %v877 = vsub.f32 0.0, %v836
        %v878 = vsub.f32 0.0, %v838
        %v879 = vsub.f32 0.0, %v840
        %v880 = vsub.f32 0.0, %v842
        %v881 = vsub.f32 0.0, %v844
        %v882 = vsub.f32 0.0, %v846
        %v883 = vsub.f32 0.0, %v848
        %v884 = vsub.f32 0.0, %v850
        %v885 = vsub.f32 0.0, %v852
        %v886 = vsub.f32 0.0, %v854
        %887 = vst.msk [vmem:[%s278] sm:$0xff] %vm722, %v855
        %888 = vst.msk [vmem:[%s278 + $0x8] sm:$0xff] %vm722, %v856
        %889 = vst.msk [vmem:[%s278 + $0x10] sm:$0xff] %vm722, %v857
        %890 = vst.msk [vmem:[%s278 + $0x18] sm:$0xff] %vm722, %v858
        %891 = vst.msk [vmem:[%s278 + $0x20] sm:$0xff] %vm722, %v859
        %892 = vst.msk [vmem:[%s278 + $0x28] sm:$0xff] %vm722, %v860
        %893 = vst.msk [vmem:[%s278 + $0x30] sm:$0xff] %vm722, %v861
        %894 = vst.msk [vmem:[%s278 + $0x38] sm:$0xff] %vm722, %v862
        %895 = vst.msk [vmem:[%s278 + $0x40] sm:$0xff] %vm722, %v863
        %896 = vst.msk [vmem:[%s278 + $0x48] sm:$0xff] %vm722, %v864
        %897 = vst.msk [vmem:[%s278 + $0x50] sm:$0xff] %vm722, %v865
        %898 = vst.msk [vmem:[%s278 + $0x58] sm:$0xff] %vm722, %v866
        %899 = vst.msk [vmem:[%s278 + $0x60] sm:$0xff] %vm722, %v867
        %900 = vst.msk [vmem:[%s278 + $0x68] sm:$0xff] %vm722, %v868
        %901 = vst.msk [vmem:[%s278 + $0x70] sm:$0xff] %vm722, %v869
        %902 = vst.msk [vmem:[%s278 + $0x78] sm:$0xff] %vm722, %v870
        %903 = vst.msk [vmem:[%s278 + $0x80] sm:$0xff] %vm722, %v871
        %904 = vst.msk [vmem:[%s278 + $0x88] sm:$0xff] %vm722, %v872
        %905 = vst.msk [vmem:[%s278 + $0x90] sm:$0xff] %vm722, %v873
        %906 = vst.msk [vmem:[%s278 + $0x98] sm:$0xff] %vm722, %v874
        %907 = vst.msk [vmem:[%s278 + $0xa0] sm:$0xff] %vm722, %v875
        %908 = vst.msk [vmem:[%s278 + $0xa8] sm:$0xff] %vm722, %v876
        %909 = vst.msk [vmem:[%s278 + $0xb0] sm:$0xff] %vm722, %v877
        %910 = vst.msk [vmem:[%s278 + $0xb8] sm:$0xff] %vm722, %v878
        %911 = vst.msk [vmem:[%s278 + $0xc0] sm:$0xff] %vm722, %v879
        %912 = vst.msk [vmem:[%s278 + $0xc8] sm:$0xff] %vm722, %v880
        %913 = vst.msk [vmem:[%s278 + $0xd0] sm:$0xff] %vm722, %v881
        %914 = vst.msk [vmem:[%s278 + $0xd8] sm:$0xff] %vm722, %v882
        %915 = vst.msk [vmem:[%s278 + $0xe0] sm:$0xff] %vm722, %v883
        %916 = vst.msk [vmem:[%s278 + $0xe8] sm:$0xff] %vm722, %v884
        %917 = vst.msk [vmem:[%s278 + $0xf0] sm:$0xff] %vm722, %v885
        %918 = vst.msk [vmem:[%s278 + $0xf8] sm:$0xff] %vm722, %v886
        %s919 = sand.u32 %s118, 1
        %s920 = scalar_lea.sflag [#allocation3], %s919
        %s921 = sand.u32 %s118, 1
        %s922 = smul.addr %s921, 128
        %s923 = scalar_lea.vmem [#allocation2], %s922
        %s924 = smul.u32 32, %s21
        %p925 = scmp.lt.s32.totalorder %s924, 63
        %s926 = scalar_select %p925, %s924, 63
        %s927 = smul.addr %s926, 8
        %s928 = scalar_lea.vmem %s5, %s927
        %s929 = smul.u32 32, %s21
        %p930 = scmp.lt.s32.totalorder %s929, 63
        %s931 = scalar_select %p930, %s929, 63
        %s932 = smul.addr %s931, 8
        %s933 = scalar_lea.vmem %s6, %s932
        // Predicated region
        $region37: #{tpu_custom_call.1} parent=35 // pred_check
          %p934 = pneg %p128
        $region38: #{tpu_custom_call.1} parent=35 // pred_check_branch
          %936 = sbr.rel (%p934) target = $region40
        $region39: #{tpu_custom_call.1} parent=35 // pred_region
          %s937 = smul.u32 32, %s21
          %939 = vsyncadd %s920, 0
          %s940 = smul.addr %s937, 4
          %s941 = scalar_lea.hbm %s4, %s940
          %s942 = sshll.u32 %s923, 4
          %s943 = int_to_ptr.vmem [resolvable:$true] %s942
          %s944 = sshll.u32 %s941, 4
          %s945 = int_to_ptr.hbm [resolvable:$true] %s944
          %950 = dma.vmem_to_hbm [thread:$0]  %s943, 2048, %s945, %s920, 64, 64, 4
        $region40: #{tpu_custom_call.1} parent=35 // pred_fallthru
          _
        // Predicated region
        $region41: #{tpu_custom_call.1} parent=35 // pred_check
          %p951 = pneg %p154
        $region42: #{tpu_custom_call.1} parent=35 // pred_check_branch
          %953 = sbr.rel (%p951) target = $region44
        $region43: #{tpu_custom_call.1} parent=35 // pred_region
          %s954 = smul.u32 32, %s21
        $region44: #{tpu_custom_call.1} parent=35 // pred_fallthru
          _
        // Predicated region
        $region45: #{tpu_custom_call.1} parent=35 // pred_check
          %p955 = pneg %p180
        $region46: #{tpu_custom_call.1} parent=35 // pred_check_branch
          %957 = sbr.rel (%p955) target = $region48
        $region47: #{tpu_custom_call.1} parent=35 // pred_region
          %s958 = smul.u32 32, %s21
        $region48: #{tpu_custom_call.1} parent=35 // pred_fallthru
          _
      $region36: #{tpu_custom_call.1} parent=5 // pred_fallthru
        _
      %p959 = scmp.le.s32.totalorder 2, %s16
      // Predicated region
      $region49: #{tpu_custom_call.1} parent=5 // pred_check
        %p960 = pneg %p959
      $region50: #{tpu_custom_call.1} parent=5 // pred_check_branch
        %962 = sbr.rel (%p960) target = $region52
      $region51: #{tpu_custom_call.1} parent=5 // pred_region
        %s963 = ssub.s32 %s16, 2
        // Predicated region
        $region53: #{tpu_custom_call.1} parent=51 // pred_check
          %p964 = pneg %p134
        $region54: #{tpu_custom_call.1} parent=51 // pred_check_branch
          %966 = sbr.rel (%p964) target = $region56
        $region55: #{tpu_custom_call.1} parent=51 // pred_region
          %s967 = sand.u32 %s119, 1
          %s968 = scalar_lea.sflag [#allocation3], %s967
          %s969 = sand.u32 %s119, 1
          %s970 = smul.addr %s969, 128
          %s971 = scalar_lea.vmem [#allocation2], %s970
          %973 = dma.done %s968, 2048
        $region56: #{tpu_custom_call.1} parent=51 // pred_fallthru
          _
        // Predicated region
        $region57: #{tpu_custom_call.1} parent=51 // pred_check
          %p974 = pneg %p160
        $region58: #{tpu_custom_call.1} parent=51 // pred_check_branch
          %976 = sbr.rel (%p974) target = $region60
        $region59: #{tpu_custom_call.1} parent=51 // pred_region
          %s977 = smul.u32 32, %s22
          %p978 = scmp.lt.s32.totalorder %s977, 63
          %s979 = scalar_select %p978, %s977, 63
          %s980 = smul.addr %s979, 8
          %s981 = scalar_lea.vmem %s5, %s980
        $region60: #{tpu_custom_call.1} parent=51 // pred_fallthru
          _
        // Predicated region
        $region61: #{tpu_custom_call.1} parent=51 // pred_check
          %p982 = pneg %p186
        $region62: #{tpu_custom_call.1} parent=51 // pred_check_branch
          %984 = sbr.rel (%p982) target = $region64
        $region63: #{tpu_custom_call.1} parent=51 // pred_region
          %s985 = smul.u32 32, %s22
          %p986 = scmp.lt.s32.totalorder %s985, 63
          %s987 = scalar_select %p986, %s985, 63
          %s988 = smul.addr %s987, 8
          %s989 = scalar_lea.vmem %s6, %s988
        $region64: #{tpu_custom_call.1} parent=51 // pred_fallthru
          _
      $region52: #{tpu_custom_call.1} parent=5 // pred_fallthru
        _
    $region6: #{tpu_custom_call.1} parent=1 // loop_footer
      %s20 = sadd.s32 1, %s16
    $region7: #{tpu_custom_call.1} parent=1 // loop_footer_branch
      %15 = sbr.rel target = $region3
    $region8: #{tpu_custom_call.1} parent=1 // loop_exit
      _
    %990 = vsyncpa [#allocation3], 1
    %s991 = scalar_lea.sflag [#allocation3], 1
    %992 = vsyncpa %s991, 1

</llo_original>
